<compile_context>
chip_gen: v7x
topology: tpu7x:2x2x1
jax: 0.10.0
libtpu: 0.0.40
codegen_flags: <defaults>
</compile_context>

<pallas_src>
import jax
import jax.numpy as jnp
from jax.experimental import pallas as pl
from jax.experimental.pallas import tpu as pltpu


H_PAD = 128   # padded hidden width (lane-dense, zero-padded -> exact results)
O_PAD = 128   # padded compute width for layer 3 (MXU operand stays lane-dense)
O_OUT = 8     # HBM output width: 5 real Q-values + 3 zero lanes (16x less writeback)


def dqn_kernel(x_ref, w1_ref, b1_ref, w2_ref, b2_ref, w3_ref, b3_ref, o_ref):
    x = x_ref[...]                                    # (TB, 3)  f32

    # ---- Layer 1 on the VPU: K=3 contraction as three broadcast FMAs ----
    # (3-row weight is tiny; avoids an MXU push/pop round-trip on the critical path)
    h1 = (x[:, 0:1] * w1_ref[0:1, :]
          + x[:, 1:2] * w1_ref[1:2, :]
          + x[:, 2:3] * w1_ref[2:3, :]
          + b1_ref[...])                              # (TB, 128)
    h1 = jnp.maximum(h1, 0.0)

    # ---- Layers 2 & 3 on the MXU (lane-dense 128-wide operands) ----
    h2 = jnp.dot(h1, w2_ref[...], preferred_element_type=jnp.float32) + b2_ref[...]
    h2 = jnp.maximum(h2, 0.0)                         # (TB, 128)

    out = jnp.dot(h2, w3_ref[...], preferred_element_type=jnp.float32) + b3_ref[...]
    # Store only the first O_OUT lanes -> 16x less HBM writeback than a 128-wide store.
    o_ref[...] = out[:, :O_OUT].astype(o_ref.dtype)   # (TB, 8)


def pad_params(params):
    """Zero-pad weights/biases to lane-dense widths ONCE (hoisted out of forward).

    Exact: padded lanes stay zero through ReLU and the final [:, :5] slice drops them.
    """
    def pad2(a, rows, cols):
        return jnp.pad(a, ((0, rows - a.shape[0]), (0, cols - a.shape[1])))
    return {
        "w1": pad2(params["w1"], 3, H_PAD),
        "b1": pad2(params["b1"], 1, H_PAD),
        "w2": pad2(params["w2"], H_PAD, H_PAD),
        "b2": pad2(params["b2"], 1, H_PAD),
        "w3": pad2(params["w3"], H_PAD, O_PAD),
        "b3": pad2(params["b3"], 1, O_PAD),
    }


def _round8(n):
    return -(-n // 8) * 8


def dqn_forward(x, padded_params, tb=4096):
    """x: (B, 3) float32. padded_params: output of pad_params() (pre-padded once).

    Returns (B, 5) float32 Q-values.
    """
    B, F = x.shape
    assert F == 3, F

    # Batch tile: multiple of 8 sublanes; don't over-pad tiny batches.
    b8 = _round8(B)
    tb = max(8, min(tb, b8))
    # Guarantee >= 2 grid steps whenever there's enough work, so the "parallel"
    # batch axis actually shards across both TensorCores on v7x (no-op cost elsewhere).
    if b8 >= 16:
        tb = min(tb, _round8(-(-b8 // 2)))
    b_pad = -(-B // tb) * tb
    if b_pad != B:
        x = jnp.pad(x, ((0, b_pad - B), (0, 0)))      # skipped when B already aligned

    p = padded_params
    grid = (b_pad // tb,)

    out_padded = pl.pallas_call(
        dqn_kernel,
        out_shape=jax.ShapeDtypeStruct((b_pad, O_OUT), jnp.float32),
        grid=grid,
        in_specs=[
            pl.BlockSpec((tb, 3), lambda i: (i, 0)),          # x: tiled over batch
            pl.BlockSpec((3, H_PAD), lambda i: (0, 0)),        # weights/biases:
            pl.BlockSpec((1, H_PAD), lambda i: (0, 0)),        # constant block index
            pl.BlockSpec((H_PAD, H_PAD), lambda i: (0, 0)),    # -> stay VMEM-resident
            pl.BlockSpec((1, H_PAD), lambda i: (0, 0)),
            pl.BlockSpec((H_PAD, O_PAD), lambda i: (0, 0)),
            pl.BlockSpec((1, O_PAD), lambda i: (0, 0)),
        ],
        out_specs=pl.BlockSpec((tb, O_OUT), lambda i: (i, 0)),  # narrow 8-lane writeback
        compiler_params=pltpu.CompilerParams(
            dimension_semantics=("parallel",)),                # 2 TCs on v7x
    )(x, p["w1"], p["b1"], p["w2"], p["b2"], p["w3"], p["b3"])

    return out_padded[:B, :5]


def init_params(key):
    """PyTorch nn.Linear default init: U(-1/sqrt(fan_in), +1/sqrt(fan_in)).
    Weights stored pre-transposed as (in_features, out_features)."""
    dims = [(3, 24), (24, 24), (24, 5)]
    params = {}
    for i, (fan_in, fan_out) in enumerate(dims, start=1):
        key, kw, kb = jax.random.split(key, 3)
        bound = 1.0 / (fan_in ** 0.5)
        params[f"w{i}"] = jax.random.uniform(
            kw, (fan_in, fan_out), jnp.float32, minval=-bound, maxval=bound)
        params[f"b{i}"] = jax.random.uniform(
            kb, (1, fan_out), jnp.float32, minval=-bound, maxval=bound)
    return params


def reference_forward(x, params):
    h1 = jnp.maximum(x @ params["w1"] + params["b1"], 0.0)
    h2 = jnp.maximum(h1 @ params["w2"] + params["b2"], 0.0)
    return h2 @ params["w3"] + params["b3"]


if __name__ == "__main__":
    key = jax.random.PRNGKey(0)
    kx, kp = jax.random.split(key)

    B = 8
    x = jax.random.normal(kx, (B, 3), jnp.float32)
    params = init_params(kp)
    padded = pad_params(params)      # pad weights once; reused across forward calls

    out = dqn_forward(x, padded)
    out = jax.block_until_ready(out)

    ref = reference_forward(x, params)
    assert out.shape == (B, 5), out.shape
    assert jnp.allclose(out, ref, atol=1e-5, rtol=1e-5), "mismatch vs reference"

    # TODO(synk): replay buffer / epsilon-greedy / optimizer from cube_controller.py are
    # training-loop machinery, not part of the DQN forward pass, so not kernelized.
    print("KERNEL_OK")
</pallas_src>

<mosaic_0001>
module attributes {stable_mosaic.version = 11 : i64} {
  func.func @dqn_kernel(%arg0: i32, %arg1: memref<8x3xf32, #tpu.memory_space<vmem>>, %arg2: memref<3x128xf32, #tpu.memory_space<vmem>>, %arg3: memref<1x128xf32, #tpu.memory_space<vmem>>, %arg4: memref<128x128xf32, #tpu.memory_space<vmem>>, %arg5: memref<1x128xf32, #tpu.memory_space<vmem>>, %arg6: memref<128x128xf32, #tpu.memory_space<vmem>>, %arg7: memref<1x128xf32, #tpu.memory_space<vmem>>, %arg8: memref<8x8xf32, #tpu.memory_space<vmem>>) attributes {dimension_semantics = [#tpu.dimension_semantics<parallel>], iteration_bounds = array<i64: 1>, scalar_prefetch = 0 : i64, scratch_operands = 0 : i64, tpu.core_type = #tpu.core_type<tc>, window_params = [{transform_indices = @transform_0, window_bounds = array<i64: 8, 3>}, {pipeline_mode = #tpu.pipeline_mode<synchronous>, transform_indices = @transform_1, window_bounds = array<i64: 3, 128>}, {pipeline_mode = #tpu.pipeline_mode<synchronous>, transform_indices = @transform_2, window_bounds = array<i64: 1, 128>}, {pipeline_mode = #tpu.pipeline_mode<synchronous>, transform_indices = @transform_3, window_bounds = array<i64: 128, 128>}, {pipeline_mode = #tpu.pipeline_mode<synchronous>, transform_indices = @transform_4, window_bounds = array<i64: 1, 128>}, {pipeline_mode = #tpu.pipeline_mode<synchronous>, transform_indices = @transform_5, window_bounds = array<i64: 128, 128>}, {pipeline_mode = #tpu.pipeline_mode<synchronous>, transform_indices = @transform_6, window_bounds = array<i64: 1, 128>}, {transform_indices = @transform_7, window_bounds = array<i64: 8, 8>}]} {
    %c0 = arith.constant 0 : index
    %c0_0 = arith.constant 0 : index
    %0 = vector.load %arg1[%c0, %c0_0] : memref<8x3xf32, #tpu.memory_space<vmem>>, vector<8x3xf32>
    %1 = vector.extract_strided_slice %0 {offsets = [0, 0], sizes = [8, 1], strides = [1, 1]} : vector<8x3xf32> to vector<8x1xf32>
    %c0_1 = arith.constant 0 : index
    %c0_2 = arith.constant 0 : index
    %2 = vector.load %arg2[%c0_1, %c0_2] : memref<3x128xf32, #tpu.memory_space<vmem>>, vector<1x128xf32>
    %3 = vector.broadcast %1 : vector<8x1xf32> to vector<8x128xf32>
    %4 = vector.broadcast %2 : vector<1x128xf32> to vector<8x128xf32>
    %5 = arith.mulf %3, %4 : vector<8x128xf32>
    %6 = vector.extract_strided_slice %0 {offsets = [0, 1], sizes = [8, 1], strides = [1, 1]} : vector<8x3xf32> to vector<8x1xf32>
    %c1 = arith.constant 1 : index
    %c0_3 = arith.constant 0 : index
    %7 = vector.load %arg2[%c1, %c0_3] : memref<3x128xf32, #tpu.memory_space<vmem>>, vector<1x128xf32>
    %8 = vector.broadcast %6 : vector<8x1xf32> to vector<8x128xf32>
    %9 = vector.broadcast %7 : vector<1x128xf32> to vector<8x128xf32>
    %10 = arith.mulf %8, %9 : vector<8x128xf32>
    %11 = arith.addf %5, %10 : vector<8x128xf32>
    %12 = vector.extract_strided_slice %0 {offsets = [0, 2], sizes = [8, 1], strides = [1, 1]} : vector<8x3xf32> to vector<8x1xf32>
    %c2 = arith.constant 2 : index
    %c0_4 = arith.constant 0 : index
    %13 = vector.load %arg2[%c2, %c0_4] : memref<3x128xf32, #tpu.memory_space<vmem>>, vector<1x128xf32>
    %14 = vector.broadcast %12 : vector<8x1xf32> to vector<8x128xf32>
    %15 = vector.broadcast %13 : vector<1x128xf32> to vector<8x128xf32>
    %16 = arith.mulf %14, %15 : vector<8x128xf32>
    %17 = arith.addf %11, %16 : vector<8x128xf32>
    %c0_5 = arith.constant 0 : index
    %c0_6 = arith.constant 0 : index
    %18 = vector.load %arg3[%c0_5, %c0_6] : memref<1x128xf32, #tpu.memory_space<vmem>>, vector<1x128xf32>
    %19 = vector.broadcast %18 : vector<1x128xf32> to vector<8x128xf32>
    %20 = arith.addf %17, %19 : vector<8x128xf32>
    %cst = arith.constant 0.000000e+00 : f32
    %21 = vector.broadcast %cst : f32 to vector<8x128xf32>
    %22 = arith.maximumf %20, %21 : vector<8x128xf32>
    %c0_7 = arith.constant 0 : index
    %c0_8 = arith.constant 0 : index
    %23 = vector.load %arg4[%c0_7, %c0_8] : memref<128x128xf32, #tpu.memory_space<vmem>>, vector<128x128xf32>
    %cst_9 = arith.constant dense<0.000000e+00> : vector<8x128xf32>
    %24 = tpu.matmul %22, %23, %cst_9 {dimension_numbers = #tpu.dot_dimension_numbers<[1], [0], [0], [1], [0, 0, 1, 1], [], []>} : vector<8x128xf32>, vector<128x128xf32>, vector<8x128xf32> -> vector<8x128xf32>
    %c0_10 = arith.constant 0 : index
    %c0_11 = arith.constant 0 : index
    %25 = vector.load %arg5[%c0_10, %c0_11] : memref<1x128xf32, #tpu.memory_space<vmem>>, vector<1x128xf32>
    %26 = vector.broadcast %25 : vector<1x128xf32> to vector<8x128xf32>
    %27 = arith.addf %24, %26 : vector<8x128xf32>
    %cst_12 = arith.constant 0.000000e+00 : f32
    %28 = vector.broadcast %cst_12 : f32 to vector<8x128xf32>
    %29 = arith.maximumf %27, %28 : vector<8x128xf32>
    %c0_13 = arith.constant 0 : index
    %c0_14 = arith.constant 0 : index
    %30 = vector.load %arg6[%c0_13, %c0_14] : memref<128x128xf32, #tpu.memory_space<vmem>>, vector<128x128xf32>
    %cst_15 = arith.constant dense<0.000000e+00> : vector<8x128xf32>
    %31 = tpu.matmul %29, %30, %cst_15 {dimension_numbers = #tpu.dot_dimension_numbers<[1], [0], [0], [1], [0, 0, 1, 1], [], []>} : vector<8x128xf32>, vector<128x128xf32>, vector<8x128xf32> -> vector<8x128xf32>
    %c0_16 = arith.constant 0 : index
    %c0_17 = arith.constant 0 : index
    %32 = vector.load %arg7[%c0_16, %c0_17] : memref<1x128xf32, #tpu.memory_space<vmem>>, vector<1x128xf32>
    %33 = vector.broadcast %32 : vector<1x128xf32> to vector<8x128xf32>
    %34 = arith.addf %31, %33 : vector<8x128xf32>
    %35 = vector.extract_strided_slice %34 {offsets = [0, 0], sizes = [8, 8], strides = [1, 1]} : vector<8x128xf32> to vector<8x8xf32>
    %c0_18 = arith.constant 0 : index
    %c0_19 = arith.constant 0 : index
    %36 = vector.load %arg8[%c0_18, %c0_19] : memref<8x8xf32, #tpu.memory_space<vmem>>, vector<8x8xf32>
    tpu.vector_store %arg8[%c0_18, %c0_19], %35 {strides = array<i32>} : memref<8x8xf32, #tpu.memory_space<vmem>>, vector<8x8xf32>,
    return
  }
  func.func @transform_0(%arg0: i32) -> (i32, i32) {
    %c0_i32 = arith.constant 0 : i32
    %c0_i32_0 = arith.constant 0 : i32
    return %arg0, %c0_i32 : i32, i32
  }
  func.func @transform_1(%arg0: i32) -> (i32, i32) {
    %c0_i32 = arith.constant 0 : i32
    %c0_i32_0 = arith.constant 0 : i32
    %c0_i32_1 = arith.constant 0 : i32
    return %c0_i32, %c0_i32_0 : i32, i32
  }
  func.func @transform_2(%arg0: i32) -> (i32, i32) {
    %c0_i32 = arith.constant 0 : i32
    %c0_i32_0 = arith.constant 0 : i32
    %c0_i32_1 = arith.constant 0 : i32
    return %c0_i32, %c0_i32_0 : i32, i32
  }
  func.func @transform_3(%arg0: i32) -> (i32, i32) {
    %c0_i32 = arith.constant 0 : i32
    %c0_i32_0 = arith.constant 0 : i32
    %c0_i32_1 = arith.constant 0 : i32
    return %c0_i32, %c0_i32_0 : i32, i32
  }
  func.func @transform_4(%arg0: i32) -> (i32, i32) {
    %c0_i32 = arith.constant 0 : i32
    %c0_i32_0 = arith.constant 0 : i32
    %c0_i32_1 = arith.constant 0 : i32
    return %c0_i32, %c0_i32_0 : i32, i32
  }
  func.func @transform_5(%arg0: i32) -> (i32, i32) {
    %c0_i32 = arith.constant 0 : i32
    %c0_i32_0 = arith.constant 0 : i32
    %c0_i32_1 = arith.constant 0 : i32
    return %c0_i32, %c0_i32_0 : i32, i32
  }
  func.func @transform_6(%arg0: i32) -> (i32, i32) {
    %c0_i32 = arith.constant 0 : i32
    %c0_i32_0 = arith.constant 0 : i32
    %c0_i32_1 = arith.constant 0 : i32
    return %c0_i32, %c0_i32_0 : i32, i32
  }
  func.func @transform_7(%arg0: i32) -> (i32, i32) {
    %c0_i32 = arith.constant 0 : i32
    %c0_i32_0 = arith.constant 0 : i32
    return %arg0, %c0_i32 : i32, i32
  }
}

</mosaic_0001>

<llo_original>
// kernel: tpu_custom_call.1
$region0: #{tpu_custom_call.1}
  #allocation0 [shape = 'u32[]', space=smem, size = 0x4, offset = 0x4, fixed_abs, tag = 'smem constant byte address 0x4 - core index']
  #allocation1 [shape = 'u32[144,128]{1,0:T(1,128)}', space=vmem, size = 0x12000, scoped, tag = 'internal scratch']
  %s0 = inlined_call_operand.vmem [shape: f32[8,3], index: 0, kind: input, shape index: {}]
  %s1 = inlined_call_operand.vmem [shape: f32[3,128], index: 1, kind: input, shape index: {}]
  %s2 = inlined_call_operand.vmem [shape: f32[1,128], index: 2, kind: input, shape index: {}]
  %s3 = inlined_call_operand.hbm [shape: f32[128,128], index: 3, kind: input, shape index: {}]
  %s4 = inlined_call_operand.vmem [shape: f32[1,128], index: 4, kind: input, shape index: {}]
  %s5 = inlined_call_operand.hbm [shape: f32[128,128], index: 5, kind: input, shape index: {}]
  %s6 = inlined_call_operand.vmem [shape: f32[1,128], index: 6, kind: input, shape index: {}]
  %s7 = inlined_call_operand.hbm [shape: f32[8,8], index: 7, kind: output, shape index: {}]
  %s8 = sld [smem:[#allocation0]]
  $region46: #{tpu_custom_call.1} parent=0
    _
  %s10 = ssub.s32 1, %s8
  %s11 = scalar_select 0, %s10, %s8
  $region1: #{tpu_custom_call.1} parent=0
    #allocation2 [shape = 'u8[65536]{0}', space=vmem, size = 0x10000, scoped, tag = 'input window, operand 3, single buffered']
    #allocation3 [shape = 's32[1]{0}', space=sflag, size = 0x4, scoped, tag = 'scoped memory for tpu_custom_call.1']
    #allocation4 [shape = 's32[1]{0}', space=sflag, size = 0x4, scoped, tag = 'scoped memory for tpu_custom_call.1']
    #allocation5 [shape = 'u8[65536]{0}', space=vmem, size = 0x10000, scoped, tag = 'input window, operand 5, single buffered']
    #allocation6 [shape = 's32[1]{0}', space=sflag, size = 0x4, scoped, tag = 'scoped memory for tpu_custom_call.1']
    #allocation7 [shape = 'u8[4096]{0}', space=vmem, size = 0x1000, scoped, tag = 'output window, operand 0, single buffered']
    %12 = vsyncpa [#allocation3], 0
    %13 = vsyncpa [#allocation6], 0
    %14 = vsyncpa [#allocation4], 0
    // Predicated region
    $region2: #{tpu_custom_call.1} parent=1 // pred_check
      _
    $region3: #{tpu_custom_call.1} parent=1 // pred_check_branch
      %16 = sbr.rel (0) target = $region5
    $region4: #{tpu_custom_call.1} parent=1 // pred_region
      _
    $region5: #{tpu_custom_call.1} parent=1 // pred_fallthru
      _
    // Predicated region
    $region6: #{tpu_custom_call.1} parent=1 // pred_check
      _
    $region7: #{tpu_custom_call.1} parent=1 // pred_check_branch
      %18 = sbr.rel (0) target = $region9
    $region8: #{tpu_custom_call.1} parent=1 // pred_region
      _
    $region9: #{tpu_custom_call.1} parent=1 // pred_fallthru
      _
    // Predicated region
    $region10: #{tpu_custom_call.1} parent=1 // pred_check
      _
    $region11: #{tpu_custom_call.1} parent=1 // pred_check_branch
      %20 = sbr.rel (0) target = $region13
    $region12: #{tpu_custom_call.1} parent=1 // pred_region
      _
    $region13: #{tpu_custom_call.1} parent=1 // pred_fallthru
      _
    // Predicated region
    $region14: #{tpu_custom_call.1} parent=1 // pred_check
      _
    $region15: #{tpu_custom_call.1} parent=1 // pred_check_branch
      %22 = sbr.rel (0) target = $region17
    $region16: #{tpu_custom_call.1} parent=1 // pred_region
      %s24 = ssub.s32 2048, 2048
      %25 = vsyncadd [#allocation3], %s24
      %s26 = sshll.u32 [#allocation2], 4
      %s27 = int_to_ptr.vmem [resolvable:$true] %s26
      %32 = dma.hbm_to_vmem [thread:$0]  %s3, 2048, %s27, [#allocation3], 128, 128, 8
    $region17: #{tpu_custom_call.1} parent=1 // pred_fallthru
      _
    // Predicated region
    $region18: #{tpu_custom_call.1} parent=1 // pred_check
      _
    $region19: #{tpu_custom_call.1} parent=1 // pred_check_branch
      %34 = sbr.rel (0) target = $region21
    $region20: #{tpu_custom_call.1} parent=1 // pred_region
      _
    $region21: #{tpu_custom_call.1} parent=1 // pred_fallthru
      _
    // Predicated region
    $region22: #{tpu_custom_call.1} parent=1 // pred_check
      _
    $region23: #{tpu_custom_call.1} parent=1 // pred_check_branch
      %36 = sbr.rel (0) target = $region25
    $region24: #{tpu_custom_call.1} parent=1 // pred_region
      %s38 = ssub.s32 2048, 2048
      %39 = vsyncadd [#allocation6], %s38
      %s40 = sshll.u32 [#allocation5], 4
      %s41 = int_to_ptr.vmem [resolvable:$true] %s40
      %46 = dma.hbm_to_vmem [thread:$0]  %s5, 2048, %s41, [#allocation6], 128, 128, 8
    $region25: #{tpu_custom_call.1} parent=1 // pred_fallthru
      _
    // Predicated region
    $region26: #{tpu_custom_call.1} parent=1 // pred_check
      _
    $region27: #{tpu_custom_call.1} parent=1 // pred_check_branch
      %48 = sbr.rel (0) target = $region29
    $region28: #{tpu_custom_call.1} parent=1 // pred_region
      _
    $region29: #{tpu_custom_call.1} parent=1 // pred_fallthru
      _
    // Predicated region
    $region30: #{tpu_custom_call.1} parent=1 // pred_check
      _
    $region31: #{tpu_custom_call.1} parent=1 // pred_check_branch
      %50 = sbr.rel (0) target = $region33
    $region32: #{tpu_custom_call.1} parent=1 // pred_region
      %51 = dma.done [#allocation3], 2048
    $region33: #{tpu_custom_call.1} parent=1 // pred_fallthru
      _
    // Predicated region
    $region34: #{tpu_custom_call.1} parent=1 // pred_check
      _
    $region35: #{tpu_custom_call.1} parent=1 // pred_check_branch
      %53 = sbr.rel (0) target = $region37
    $region36: #{tpu_custom_call.1} parent=1 // pred_region
      %54 = dma.done [#allocation6], 2048
    $region37: #{tpu_custom_call.1} parent=1 // pred_fallthru
      _
    %v55 = vld [vmem:[%s0] sm:$0xff]
    %v56 = vld [vmem:[%s1] sm:$0x1]
    %58 = vset.pattern.permute.xlu0 0
    %59 = vperm.xlu0 %58, %v55
    %v60 = vpop.permute.xlu0 %59
    %v62 = vlaneseq
    %v63 = vshrl.u32 %v62, 7
    %v64 = vsub.s32 0, %v63
    %v65 = vrot.slane %v56, %v64
    %v66 = vmul.f32 %v60, %v65
    %v67 = vld [vmem:[%s1 + $0x1] sm:$0x1]
    %68 = vset.pattern.permute.xlu0 1
    %69 = vperm.xlu0 %68, %v55
    %v70 = vpop.permute.xlu0 %69
    %v72 = vlaneseq
    %v73 = vshrl.u32 %v72, 7
    %v74 = vsub.s32 0, %v73
    %v75 = vrot.slane %v67, %v74
    %v76 = vmul.f32 %v70, %v75
    %v77 = vadd.f32 %v66, %v76
    %v78 = vld [vmem:[%s1 + $0x2] sm:$0x1]
    %79 = vset.pattern.permute.xlu0 2
    %80 = vperm.xlu0 %79, %v55
    %v81 = vpop.permute.xlu0 %80
    %v83 = vlaneseq
    %v84 = vshrl.u32 %v83, 7
    %v85 = vsub.s32 0, %v84
    %v86 = vrot.slane %v78, %v85
    %v87 = vmul.f32 %v81, %v86
    %v88 = vadd.f32 %v77, %v87
    %v89 = vld [vmem:[%s2] sm:$0x1]
    %v91 = vlaneseq
    %v92 = vshrl.u32 %v91, 7
    %v93 = vsub.s32 0, %v92
    %v94 = vrot.slane %v89, %v93
    %v96 = vadd.f32 %v88, %v94
    %v97 = vmax.f32 %v96, 0.0
    %v98 = vld [vmem:[#allocation2] sm:$0xff]
    %v99 = vld [vmem:[#allocation2 + $0x8] sm:$0xff]
    %v100 = vld [vmem:[#allocation2 + $0x10] sm:$0xff]
    %v101 = vld [vmem:[#allocation2 + $0x18] sm:$0xff]
    %v102 = vld [vmem:[#allocation2 + $0x20] sm:$0xff]
    %v103 = vld [vmem:[#allocation2 + $0x28] sm:$0xff]
    %v104 = vld [vmem:[#allocation2 + $0x30] sm:$0xff]
    %v105 = vld [vmem:[#allocation2 + $0x38] sm:$0xff]
    %v106 = vld [vmem:[#allocation2 + $0x40] sm:$0xff]
    %v107 = vld [vmem:[#allocation2 + $0x48] sm:$0xff]
    %v108 = vld [vmem:[#allocation2 + $0x50] sm:$0xff]
    %v109 = vld [vmem:[#allocation2 + $0x58] sm:$0xff]
    %v110 = vld [vmem:[#allocation2 + $0x60] sm:$0xff]
    %v111 = vld [vmem:[#allocation2 + $0x68] sm:$0xff]
    %v112 = vld [vmem:[#allocation2 + $0x70] sm:$0xff]
    %v113 = vld [vmem:[#allocation2 + $0x78] sm:$0xff]
    %v114 = vld [vmem:[%s4] sm:$0x1]
    %v116 = vlaneseq
    %v117 = vshrl.u32 %v116, 7
    %v118 = vsub.s32 0, %v117
    %v119 = vrot.slane %v114, %v118
    %121 = vmatprep.subr.mxu0 0.0
    %122 = vmatpush1.msra.mxu0 %v98
    %123 = vmatprep.subr.mxu0 0.0
    %124 = vmatpush1.msra.mxu0 %v99
    %125 = vmatprep.subr.mxu0 0.0
    %126 = vmatpush1.msra.mxu0 %v100
    %127 = vmatprep.subr.mxu0 0.0
    %128 = vmatpush1.msra.mxu0 %v101
    %129 = vmatprep.subr.mxu0 0.0
    %130 = vmatpush1.msra.mxu0 %v102
    %131 = vmatprep.subr.mxu0 0.0
    %132 = vmatpush1.msra.mxu0 %v103
    %133 = vmatprep.subr.mxu0 0.0
    %134 = vmatpush1.msra.mxu0 %v104
    %135 = vmatprep.subr.mxu0 0.0
    %136 = vmatpush1.msra.mxu0 %v105
    %137 = vmatprep.subr.mxu0 0.0
    %138 = vmatpush1.msra.mxu0 %v106
    %139 = vmatprep.subr.mxu0 0.0
    %140 = vmatpush1.msra.mxu0 %v107
    %141 = vmatprep.subr.mxu0 0.0
    %142 = vmatpush1.msra.mxu0 %v108
    %143 = vmatprep.subr.mxu0 0.0
    %144 = vmatpush1.msra.mxu0 %v109
    %145 = vmatprep.subr.mxu0 0.0
    %146 = vmatpush1.msra.mxu0 %v110
    %147 = vmatprep.subr.mxu0 0.0
    %148 = vmatpush1.msra.mxu0 %v111
    %149 = vmatprep.subr.mxu0 0.0
    %150 = vmatpush1.msra.mxu0 %v112
    %151 = vmatprep.subr.mxu0 0.0
    %152 = vmatpush1.msra.mxu0 %v113
    %153 = vmatprep.subr.mxu0 0.0
    %154 = vmatpush1.msra.mxu0 0.0
    %155 = vmatprep.subr.mxu0 0.0
    %156 = vmatpush1.msra.mxu0 0.0
    %157 = vmatprep.subr.mxu0 0.0
    %158 = vmatpush1.msra.mxu0 0.0
    %159 = vmatprep.subr.mxu0 0.0
    %160 = vmatpush1.msra.mxu0 0.0
    %161 = vmatprep.subr.mxu0 0.0
    %162 = vmatpush1.msra.mxu0 0.0
    %163 = vmatprep.subr.mxu0 0.0
    %164 = vmatpush1.msra.mxu0 0.0
    %165 = vmatprep.subr.mxu0 0.0
    %166 = vmatpush1.msra.mxu0 0.0
    %167 = vmatprep.subr.mxu0 0.0
    %168 = vmatpush1.msra.mxu0 0.0
    %169 = vmatprep.subr.mxu0 0.0
    %170 = vmatpush1.msra.mxu0 0.0
    %171 = vmatprep.subr.mxu0 0.0
    %172 = vmatpush1.msra.mxu0 0.0
    %173 = vmatprep.subr.mxu0 0.0
    %174 = vmatpush1.msra.mxu0 0.0
    %175 = vmatprep.subr.mxu0 0.0
    %176 = vmatpush1.msra.mxu0 0.0
    %177 = vmatprep.subr.mxu0 0.0
    %178 = vmatpush1.msra.mxu0 0.0
    %179 = vmatprep.subr.mxu0 0.0
    %180 = vmatpush1.msra.mxu0 0.0
    %181 = vmatprep.subr.mxu0 0.0
    %182 = vmatpush1.msra.mxu0 0.0
    %183 = vmatprep.subr.mxu0 0.0
    %184 = vmatpush1.msra.mxu0 0.0
    %185 = vmatprep.mubr.f32.mxu0 0.0
    %186 = vmatmul.mubr.f32.gmra.mrb[0].mxu0 %v97
    %v187 = vpop.f32.mrb[0].mxu0
    %v188 = vadd.f32 %v119, %v187
    %v189 = vpop.f32.mrb[0].mxu0
    %190 = vdwg.mxu0
    %v191 = vmax.f32 %v188, 0.0
    %v192 = vld [vmem:[#allocation5] sm:$0xff]
    %v193 = vld [vmem:[#allocation5 + $0x8] sm:$0xff]
    %v194 = vld [vmem:[#allocation5 + $0x10] sm:$0xff]
    %v195 = vld [vmem:[#allocation5 + $0x18] sm:$0xff]
    %v196 = vld [vmem:[#allocation5 + $0x20] sm:$0xff]
    %v197 = vld [vmem:[#allocation5 + $0x28] sm:$0xff]
    %v198 = vld [vmem:[#allocation5 + $0x30] sm:$0xff]
    %v199 = vld [vmem:[#allocation5 + $0x38] sm:$0xff]
    %v200 = vld [vmem:[#allocation5 + $0x40] sm:$0xff]
    %v201 = vld [vmem:[#allocation5 + $0x48] sm:$0xff]
    %v202 = vld [vmem:[#allocation5 + $0x50] sm:$0xff]
    %v203 = vld [vmem:[#allocation5 + $0x58] sm:$0xff]
    %v204 = vld [vmem:[#allocation5 + $0x60] sm:$0xff]
    %v205 = vld [vmem:[#allocation5 + $0x68] sm:$0xff]
    %v206 = vld [vmem:[#allocation5 + $0x70] sm:$0xff]
    %v207 = vld [vmem:[#allocation5 + $0x78] sm:$0xff]
    %v208 = vld [vmem:[%s6] sm:$0x1]
    %v210 = vlaneseq
    %v211 = vshrl.u32 %v210, 7
    %v212 = vsub.s32 0, %v211
    %v213 = vrot.slane %v208, %v212
    %215 = vmatprep.subr.mxu0 0.0
    %216 = vmatpush1.msra.mxu0 %v192
    %217 = vmatprep.subr.mxu0 0.0
    %218 = vmatpush1.msra.mxu0 %v193
    %219 = vmatprep.subr.mxu0 0.0
    %220 = vmatpush1.msra.mxu0 %v194
    %221 = vmatprep.subr.mxu0 0.0
    %222 = vmatpush1.msra.mxu0 %v195
    %223 = vmatprep.subr.mxu0 0.0
    %224 = vmatpush1.msra.mxu0 %v196
    %225 = vmatprep.subr.mxu0 0.0
    %226 = vmatpush1.msra.mxu0 %v197
    %227 = vmatprep.subr.mxu0 0.0
    %228 = vmatpush1.msra.mxu0 %v198
    %229 = vmatprep.subr.mxu0 0.0
    %230 = vmatpush1.msra.mxu0 %v199
    %231 = vmatprep.subr.mxu0 0.0
    %232 = vmatpush1.msra.mxu0 %v200
    %233 = vmatprep.subr.mxu0 0.0
    %234 = vmatpush1.msra.mxu0 %v201
    %235 = vmatprep.subr.mxu0 0.0
    %236 = vmatpush1.msra.mxu0 %v202
    %237 = vmatprep.subr.mxu0 0.0
    %238 = vmatpush1.msra.mxu0 %v203
    %239 = vmatprep.subr.mxu0 0.0
    %240 = vmatpush1.msra.mxu0 %v204
    %241 = vmatprep.subr.mxu0 0.0
    %242 = vmatpush1.msra.mxu0 %v205
    %243 = vmatprep.subr.mxu0 0.0
    %244 = vmatpush1.msra.mxu0 %v206
    %245 = vmatprep.subr.mxu0 0.0
    %246 = vmatpush1.msra.mxu0 %v207
    %247 = vmatprep.subr.mxu0 0.0
    %248 = vmatpush1.msra.mxu0 0.0
    %249 = vmatprep.subr.mxu0 0.0
    %250 = vmatpush1.msra.mxu0 0.0
    %251 = vmatprep.subr.mxu0 0.0
    %252 = vmatpush1.msra.mxu0 0.0
    %253 = vmatprep.subr.mxu0 0.0
    %254 = vmatpush1.msra.mxu0 0.0
    %255 = vmatprep.subr.mxu0 0.0
    %256 = vmatpush1.msra.mxu0 0.0
    %257 = vmatprep.subr.mxu0 0.0
    %258 = vmatpush1.msra.mxu0 0.0
    %259 = vmatprep.subr.mxu0 0.0
    %260 = vmatpush1.msra.mxu0 0.0
    %261 = vmatprep.subr.mxu0 0.0
    %262 = vmatpush1.msra.mxu0 0.0
    %263 = vmatprep.subr.mxu0 0.0
    %264 = vmatpush1.msra.mxu0 0.0
    %265 = vmatprep.subr.mxu0 0.0
    %266 = vmatpush1.msra.mxu0 0.0
    %267 = vmatprep.subr.mxu0 0.0
    %268 = vmatpush1.msra.mxu0 0.0
    %269 = vmatprep.subr.mxu0 0.0
    %270 = vmatpush1.msra.mxu0 0.0
    %271 = vmatprep.subr.mxu0 0.0
    %272 = vmatpush1.msra.mxu0 0.0
    %273 = vmatprep.subr.mxu0 0.0
    %274 = vmatpush1.msra.mxu0 0.0
    %275 = vmatprep.subr.mxu0 0.0
    %276 = vmatpush1.msra.mxu0 0.0
    %277 = vmatprep.subr.mxu0 0.0
    %278 = vmatpush1.msra.mxu0 0.0
    %279 = vmatprep.mubr.f32.mxu0 0.0
    %280 = vmatmul.mubr.f32.gmra.mrb[0].mxu0 %v191
    %v281 = vpop.f32.mrb[0].mxu0
    %v282 = vadd.f32 %v213, %v281
    %v283 = vpop.f32.mrb[0].mxu0
    %284 = vdwg.mxu0
    %vm285 = vcmask 64512
    %286 = vst.msk [vmem:[#allocation7] sm:$0xff] %vm285, %v282
    // Predicated region
    $region38: #{tpu_custom_call.1} parent=1 // pred_check
      _
    $region39: #{tpu_custom_call.1} parent=1 // pred_check_branch
      %288 = sbr.rel (0) target = $region41
    $region40: #{tpu_custom_call.1} parent=1 // pred_region
      %s290 = ssub.s32 128, 128
      %291 = vsyncadd [#allocation4], %s290
      %s293 = sshll.u32 [#allocation7], 4
      %s294 = int_to_ptr.vmem [resolvable:$true] %s293
      %296 = dma.vmem_to_hbm [thread:$0]  %s294, 128, %s7, [#allocation4]
    $region41: #{tpu_custom_call.1} parent=1 // pred_fallthru
      _
    // Predicated region
    $region42: #{tpu_custom_call.1} parent=1 // pred_check
      _
    $region43: #{tpu_custom_call.1} parent=1 // pred_check_branch
      %298 = sbr.rel (0) target = $region45
    $region44: #{tpu_custom_call.1} parent=1 // pred_region
      %299 = dma.done [#allocation4], 128
    $region45: #{tpu_custom_call.1} parent=1 // pred_fallthru
      _
    %300 = vsyncpa [#allocation3], 1
    %301 = vsyncpa [#allocation6], 1
    %302 = vsyncpa [#allocation4], 1

</llo_original>
